<compile_context>
chip_gen: v6e
topology: v6e:2x2x1
jax: 0.10.0
libtpu: 0.0.40
codegen_flags: <defaults>
</compile_context>

<pallas_src>
import jax
import jax.numpy as jnp
from jax.experimental import pallas as pl
from jax.experimental.pallas import tpu as pltpu

OUT_PAD = 128  # lane-dense output width; column 0 carries the logit


def _round_up(n, m):
    return ((n + m - 1) // m) * m


def _sigmoid(x):
    # exp and the approximate reciprocal both run on the EUP slot, keeping the
    # VALU free for the element-wise combine (|Δ| / product) region.
    return pl.reciprocal(1.0 + jnp.exp(-x), approx=True)


def siamese_kernel(xa_ref, xb_ref,
                   w1_ref, b1_ref, w2_ref, b2_ref,
                   wf1_ref, wf2_ref, wf3_ref, wf4_ref, bf_ref,
                   wo_ref, bo_ref, out_ref):
    tb = out_ref.shape[0]          # batch tile (static)
    bt = jnp.bfloat16

    # One projector matmul per modality covers BOTH siamese branches:
    # rows [0:tb] of the block are x1's tile, rows [tb:2tb] are x2's tile.
    pa = _sigmoid(jnp.dot(xa_ref[...], w1_ref[...],
                          preferred_element_type=jnp.float32) + b1_ref[...])
    pb = _sigmoid(jnp.dot(xb_ref[...], w2_ref[...],
                          preferred_element_type=jnp.float32) + b2_ref[...])
    p1a, p2a = pa[:tb, :], pa[tb:, :]
    p1b, p2b = pb[:tb, :], pb[tb:, :]

    # comb_function == 'concat':  inp = [ |x1 - x2| , x1 * x2 ]  with
    # x1 = cat(p1a, p1b), x2 = cat(p2a, p2b).  fc1 over the virtual concat is
    # computed with four pre-split weight row blocks (no in-kernel concat).
    sub_a = jnp.abs(p1a - p2a).astype(bt)
    sub_b = jnp.abs(p1b - p2b).astype(bt)
    ang_a = (p1a * p2a).astype(bt)
    ang_b = (p1b * p2b).astype(bt)

    h = _sigmoid(
        jnp.dot(sub_a, wf1_ref[...], preferred_element_type=jnp.float32)
        + jnp.dot(sub_b, wf2_ref[...], preferred_element_type=jnp.float32)
        + jnp.dot(ang_a, wf3_ref[...], preferred_element_type=jnp.float32)
        + jnp.dot(ang_b, wf4_ref[...], preferred_element_type=jnp.float32)
        + bf_ref[...])

    # Output layer has N=1: VPU multiply + lane reduction instead of an MXU
    # matmul, then a lane-dense (unmasked) store.  Column 0 holds the logit.
    logit = jnp.sum(h * wo_ref[...], axis=-1, keepdims=True) + bo_ref[0, 0]
    out_ref[...] = jnp.broadcast_to(logit, out_ref.shape)


def _pad_batch(x, b_pad):
    b = x.shape[0]
    if b == b_pad:
        return x
    return jnp.pad(x, ((0, b_pad - b), (0, 0)))


def _pack_branches(x1m, x2m, tb):
    """Block-interleave the two siamese branches along the batch axis so that
    grid step i sees [x1 rows of tile i ; x2 rows of tile i] as one contiguous
    (2*tb, D) block (lets the kernel run a single projector matmul for both
    branches, with no in-kernel reshape/concat)."""
    b_pad, d = x1m.shape
    nb = b_pad // tb
    stacked = jnp.stack([x1m, x2m], axis=0)          # (2, B_pad, D)
    tiled = stacked.reshape(2, nb, tb, d)
    return tiled.transpose(1, 0, 2, 3).reshape(nb * 2 * tb, d)


def siamese_regressor_forward(x1, x2, params, *, block_b=None):
    """x1, x2: tuples of two (B, D) arrays (the two modalities)."""
    x1a, x1b = x1
    x2a, x2b = x2
    B, D1 = x1a.shape
    D2 = x1b.shape[1]
    H = params["w1"].shape[1]       # hidden_input_dim
    HD = params["wf"].shape[1]      # hidden_dim

    # --- batch tiling (sized for v7x's 64 MiB VMEM / ~32 MiB scoped) --------
    tb = _round_up(min(block_b or 512, _round_up(B, 8)), 8)
    b_pad = _round_up(B, tb)
    nb = b_pad // tb

    bt = jnp.bfloat16
    x1a_p = _pad_batch(x1a.astype(bt), b_pad)
    x2a_p = _pad_batch(x2a.astype(bt), b_pad)
    x1b_p = _pad_batch(x1b.astype(bt), b_pad)
    x2b_p = _pad_batch(x2b.astype(bt), b_pad)
    xa = _pack_branches(x1a_p, x2a_p, tb)            # (2*B_pad, D1)
    xb = _pack_branches(x1b_p, x2b_p, tb)            # (2*B_pad, D2)

    # Weights in bf16 for the MXU; biases stay f32.  fc1 weight pre-split into
    # the four row blocks matching [|Δa|, |Δb|, a1*a2, b1*b2].
    w1 = params["w1"].astype(bt)
    w2 = params["w2"].astype(bt)
    wf = params["wf"].astype(bt)
    wf1, wf2, wf3, wf4 = (wf[k * H:(k + 1) * H, :] for k in range(4))
    b1 = params["b1"].astype(jnp.float32)
    b2 = params["b2"].astype(jnp.float32)
    bfc = params["bf"].astype(jnp.float32)
    wo_row = params["wo"].reshape(1, HD).astype(jnp.float32)   # VPU reduce weight
    bo = params["bo"].reshape(1, 1).astype(jnp.float32)        # scalar -> SMEM

    def const(shape):
        return pl.BlockSpec(shape, lambda i: (0, 0))

    in_specs = [
        pl.BlockSpec((2 * tb, D1), lambda i: (i, 0)),   # xa (both branches)
        pl.BlockSpec((2 * tb, D2), lambda i: (i, 0)),   # xb (both branches)
        const((D1, H)), const((1, H)),                  # projector1
        const((D2, H)), const((1, H)),                  # projector2
        const((H, HD)), const((H, HD)),                 # fc1 row blocks
        const((H, HD)), const((H, HD)),
        const((1, HD)),                                 # fc1 bias
        const((1, HD)),                                 # output weight row
        pl.BlockSpec(memory_space=pltpu.MemorySpace.SMEM),  # output bias scalar
    ]
    out_spec = pl.BlockSpec((tb, OUT_PAD), lambda i: (i, 0))

    flops = (4 * b_pad * H * (D1 + D2)     # fused projector matmuls
             + 8 * b_pad * H * HD          # fc1 (four row blocks)
             + 2 * b_pad * HD)             # output reduction
    transcendentals = 4 * b_pad * H + b_pad * HD
    bytes_accessed = (2 * b_pad * (D1 + D2) * 2          # bf16 activations
                      + (D1 + D2) * H * 2 + 4 * H * HD * 2
                      + (2 * H + 2 * HD + 1) * 4
                      + b_pad * OUT_PAD * 4)

    out = pl.pallas_call(
        siamese_kernel,
        grid=(nb,),
        in_specs=in_specs,
        out_specs=out_spec,
        out_shape=jax.ShapeDtypeStruct((b_pad, OUT_PAD), jnp.float32),
        compiler_params=pltpu.CompilerParams(
            dimension_semantics=("parallel",),
            vmem_limit_bytes=32 * 1024 * 1024),
        cost_estimate=pl.CostEstimate(flops=flops,
                                      transcendentals=transcendentals,
                                      bytes_accessed=bytes_accessed),
    )(xa, xb, w1, b1, w2, b2, wf1, wf2, wf3, wf4, bfc, wo_row, bo)

    return out[:B, :1]


def init_params(key, input1_dim, input2_dim, hidden_input_dim, hidden_dim):
    """PyTorch-Linear-style uniform init, deterministic from `key`.
    Weights are stored transposed vs. PyTorch: (in_features, out_features)."""
    def linear(k, fan_in, fan_out):
        kw, kb = jax.random.split(k)
        bound = 1.0 / jnp.sqrt(fan_in)
        w = jax.random.uniform(kw, (fan_in, fan_out), jnp.float32, -bound, bound)
        b = jax.random.uniform(kb, (1, fan_out), jnp.float32, -bound, bound)
        return w, b

    k1, k2, k3, k4 = jax.random.split(key, 4)
    w1, b1 = linear(k1, input1_dim, hidden_input_dim)        # projector1
    w2, b2 = linear(k2, input2_dim, hidden_input_dim)        # projector2
    wf, bf = linear(k3, 4 * hidden_input_dim, hidden_dim)    # fc1 (concat comb)
    wo, bo = linear(k4, hidden_dim, 1)                       # output
    return dict(w1=w1, b1=b1, w2=w2, b2=b2, wf=wf, bf=bf, wo=wo, bo=bo)


def reference_forward(x1, x2, p):
    """Pure-JAX reference of the PyTorch forward using the same bf16-matmul /
    f32-accumulate recipe as the kernel (sigmoid kept exact)."""
    bt = jnp.bfloat16
    f32 = jnp.float32

    def dot(a, w):
        return jnp.dot(a.astype(bt), w.astype(bt), preferred_element_type=f32)

    def project(a, b):
        pa = jax.nn.sigmoid(dot(a, p["w1"]) + p["b1"])
        pb = jax.nn.sigmoid(dot(b, p["w2"]) + p["b2"])
        return jnp.concatenate([pa, pb], axis=1)

    c1 = project(*x1)
    c2 = project(*x2)
    inp = jnp.concatenate([jnp.abs(c1 - c2), c1 * c2], axis=1)
    h = jax.nn.sigmoid(dot(inp, p["wf"]) + p["bf"])
    return (jnp.dot(h, p["wo"], preferred_element_type=f32) + p["bo"]).reshape(-1, 1)


if __name__ == "__main__":
    # Small shapes consistent with the module's forward; B is deliberately not
    # a multiple of the batch tile to exercise the padding path, and block_b=8
    # gives a 2-step grid to exercise the pipeline.
    B = 12
    INPUT1_DIM = 64
    INPUT2_DIM = 48
    HIDDEN_INPUT_DIM = 32
    HIDDEN_DIM = 16

    key = jax.random.PRNGKey(0)
    kp, ka, kb, kc, kd = jax.random.split(key, 5)

    params = init_params(kp, INPUT1_DIM, INPUT2_DIM, HIDDEN_INPUT_DIM, HIDDEN_DIM)

    x1 = (jax.random.normal(ka, (B, INPUT1_DIM), jnp.float32),
          jax.random.normal(kb, (B, INPUT2_DIM), jnp.float32))
    x2 = (jax.random.normal(kc, (B, INPUT1_DIM), jnp.float32),
          jax.random.normal(kd, (B, INPUT2_DIM), jnp.float32))

    logits = siamese_regressor_forward(x1, x2, params, block_b=8)
    logits = jax.block_until_ready(logits)

    ref = reference_forward(x1, x2, params)
    assert logits.shape == (B, 1), logits.shape
    err = float(jnp.max(jnp.abs(logits - ref)))
    # Tolerance covers bf16 MXU matmuls + the EUP approx-reciprocal sigmoid
    # vs. the exact-sigmoid reference.
    assert err < 5e-2, f"mismatch: max abs err {err}"

    print("KERNEL_OK")
</pallas_src>

<mosaic_0001>
module attributes {stable_mosaic.version = 11 : i64} {
  func.func @siamese_kernel(%arg0: i32, %arg1: memref<16x64xbf16, #tpu.memory_space<vmem>>, %arg2: memref<16x48xbf16, #tpu.memory_space<vmem>>, %arg3: memref<64x32xbf16, #tpu.memory_space<vmem>>, %arg4: memref<1x32xf32, #tpu.memory_space<vmem>>, %arg5: memref<48x32xbf16, #tpu.memory_space<vmem>>, %arg6: memref<1x32xf32, #tpu.memory_space<vmem>>, %arg7: memref<32x16xbf16, #tpu.memory_space<vmem>>, %arg8: memref<32x16xbf16, #tpu.memory_space<vmem>>, %arg9: memref<32x16xbf16, #tpu.memory_space<vmem>>, %arg10: memref<32x16xbf16, #tpu.memory_space<vmem>>, %arg11: memref<1x16xf32, #tpu.memory_space<vmem>>, %arg12: memref<1x16xf32, #tpu.memory_space<vmem>>, %arg13: memref<1x1xf32, #tpu.memory_space<smem>>, %arg14: memref<8x128xf32, #tpu.memory_space<vmem>>) attributes {dimension_semantics = [#tpu.dimension_semantics<parallel>], iteration_bounds = array<i64: 2>, scalar_prefetch = 0 : i64, scratch_operands = 0 : i64, tpu.core_type = #tpu.core_type<tc>, window_params = [{transform_indices = @transform_0, window_bounds = array<i64: 16, 64>}, {transform_indices = @transform_1, window_bounds = array<i64: 16, 48>}, {pipeline_mode = #tpu.pipeline_mode<synchronous>, transform_indices = @transform_2, window_bounds = array<i64: 64, 32>}, {pipeline_mode = #tpu.pipeline_mode<synchronous>, transform_indices = @transform_3, window_bounds = array<i64: 1, 32>}, {pipeline_mode = #tpu.pipeline_mode<synchronous>, transform_indices = @transform_4, window_bounds = array<i64: 48, 32>}, {pipeline_mode = #tpu.pipeline_mode<synchronous>, transform_indices = @transform_5, window_bounds = array<i64: 1, 32>}, {pipeline_mode = #tpu.pipeline_mode<synchronous>, transform_indices = @transform_6, window_bounds = array<i64: 32, 16>}, {pipeline_mode = #tpu.pipeline_mode<synchronous>, transform_indices = @transform_7, window_bounds = array<i64: 32, 16>}, {pipeline_mode = #tpu.pipeline_mode<synchronous>, transform_indices = @transform_8, window_bounds = array<i64: 32, 16>}, {pipeline_mode = #tpu.pipeline_mode<synchronous>, transform_indices = @transform_9, window_bounds = array<i64: 32, 16>}, {pipeline_mode = #tpu.pipeline_mode<synchronous>, transform_indices = @transform_10, window_bounds = array<i64: 1, 16>}, {pipeline_mode = #tpu.pipeline_mode<synchronous>, transform_indices = @transform_11, window_bounds = array<i64: 1, 16>}, {transform_indices = @transform_12, window_bounds = array<i64: 1, 1>}, {transform_indices = @transform_13, window_bounds = array<i64: 8, 128>}]} {
    %c0 = arith.constant 0 : index
    %c0_0 = arith.constant 0 : index
    %0 = vector.load %arg1[%c0, %c0_0] : memref<16x64xbf16, #tpu.memory_space<vmem>>, vector<16x64xbf16>
    %c0_1 = arith.constant 0 : index
    %c0_2 = arith.constant 0 : index
    %1 = vector.load %arg3[%c0_1, %c0_2] : memref<64x32xbf16, #tpu.memory_space<vmem>>, vector<64x32xbf16>
    %cst = arith.constant dense<0.000000e+00> : vector<16x32xf32>
    %2 = tpu.matmul %0, %1, %cst {dimension_numbers = #tpu.dot_dimension_numbers<[1], [0], [0], [1], [0, 0, 1, 1], [], []>} : vector<16x64xbf16>, vector<64x32xbf16>, vector<16x32xf32> -> vector<16x32xf32>
    %c0_3 = arith.constant 0 : index
    %c0_4 = arith.constant 0 : index
    %3 = vector.load %arg4[%c0_3, %c0_4] : memref<1x32xf32, #tpu.memory_space<vmem>>, vector<1x32xf32>
    %4 = vector.broadcast %3 : vector<1x32xf32> to vector<16x32xf32>
    %5 = arith.addf %2, %4 : vector<16x32xf32>
    %cst_5 = arith.constant 0.000000e+00 : f32
    %6 = vector.broadcast %cst_5 : f32 to vector<16x32xf32>
    %7 = arith.subf %6, %5 : vector<16x32xf32>
    %8 = math.exp %7 : vector<16x32xf32>
    %cst_6 = arith.constant 1.000000e+00 : f32
    %9 = vector.broadcast %cst_6 : f32 to vector<16x32xf32>
    %10 = arith.addf %9, %8 : vector<16x32xf32>
    %11 = tpu.reciprocal %10 {approx = true} : vector<16x32xf32> -> vector<16x32xf32>
    %c0_7 = arith.constant 0 : index
    %c0_8 = arith.constant 0 : index
    %12 = vector.load %arg2[%c0_7, %c0_8] : memref<16x48xbf16, #tpu.memory_space<vmem>>, vector<16x48xbf16>
    %c0_9 = arith.constant 0 : index
    %c0_10 = arith.constant 0 : index
    %13 = vector.load %arg5[%c0_9, %c0_10] : memref<48x32xbf16, #tpu.memory_space<vmem>>, vector<48x32xbf16>
    %cst_11 = arith.constant dense<0.000000e+00> : vector<16x32xf32>
    %14 = tpu.matmul %12, %13, %cst_11 {dimension_numbers = #tpu.dot_dimension_numbers<[1], [0], [0], [1], [0, 0, 1, 1], [], []>} : vector<16x48xbf16>, vector<48x32xbf16>, vector<16x32xf32> -> vector<16x32xf32>
    %c0_12 = arith.constant 0 : index
    %c0_13 = arith.constant 0 : index
    %15 = vector.load %arg6[%c0_12, %c0_13] : memref<1x32xf32, #tpu.memory_space<vmem>>, vector<1x32xf32>
    %16 = vector.broadcast %15 : vector<1x32xf32> to vector<16x32xf32>
    %17 = arith.addf %14, %16 : vector<16x32xf32>
    %cst_14 = arith.constant 0.000000e+00 : f32
    %18 = vector.broadcast %cst_14 : f32 to vector<16x32xf32>
    %19 = arith.subf %18, %17 : vector<16x32xf32>
    %20 = math.exp %19 : vector<16x32xf32>
    %cst_15 = arith.constant 1.000000e+00 : f32
    %21 = vector.broadcast %cst_15 : f32 to vector<16x32xf32>
    %22 = arith.addf %21, %20 : vector<16x32xf32>
    %23 = tpu.reciprocal %22 {approx = true} : vector<16x32xf32> -> vector<16x32xf32>
    %24 = vector.extract_strided_slice %11 {offsets = [0, 0], sizes = [8, 32], strides = [1, 1]} : vector<16x32xf32> to vector<8x32xf32>
    %25 = vector.extract_strided_slice %11 {offsets = [8, 0], sizes = [8, 32], strides = [1, 1]} : vector<16x32xf32> to vector<8x32xf32>
    %26 = vector.extract_strided_slice %23 {offsets = [0, 0], sizes = [8, 32], strides = [1, 1]} : vector<16x32xf32> to vector<8x32xf32>
    %27 = vector.extract_strided_slice %23 {offsets = [8, 0], sizes = [8, 32], strides = [1, 1]} : vector<16x32xf32> to vector<8x32xf32>
    %28 = arith.subf %24, %25 : vector<8x32xf32>
    %29 = math.absf %28 : vector<8x32xf32>
    %30 = arith.truncf %29 : vector<8x32xf32> to vector<8x32xbf16>
    %31 = arith.subf %26, %27 : vector<8x32xf32>
    %32 = math.absf %31 : vector<8x32xf32>
    %33 = arith.truncf %32 : vector<8x32xf32> to vector<8x32xbf16>
    %34 = arith.mulf %24, %25 : vector<8x32xf32>
    %35 = arith.truncf %34 : vector<8x32xf32> to vector<8x32xbf16>
    %36 = arith.mulf %26, %27 : vector<8x32xf32>
    %37 = arith.truncf %36 : vector<8x32xf32> to vector<8x32xbf16>
    %c0_16 = arith.constant 0 : index
    %c0_17 = arith.constant 0 : index
    %38 = vector.load %arg7[%c0_16, %c0_17] : memref<32x16xbf16, #tpu.memory_space<vmem>>, vector<32x16xbf16>
    %cst_18 = arith.constant dense<0.000000e+00> : vector<8x16xf32>
    %39 = tpu.matmul %30, %38, %cst_18 {dimension_numbers = #tpu.dot_dimension_numbers<[1], [0], [0], [1], [0, 0, 1, 1], [], []>} : vector<8x32xbf16>, vector<32x16xbf16>, vector<8x16xf32> -> vector<8x16xf32>
    %c0_19 = arith.constant 0 : index
    %c0_20 = arith.constant 0 : index
    %40 = vector.load %arg8[%c0_19, %c0_20] : memref<32x16xbf16, #tpu.memory_space<vmem>>, vector<32x16xbf16>
    %cst_21 = arith.constant dense<0.000000e+00> : vector<8x16xf32>
    %41 = tpu.matmul %33, %40, %cst_21 {dimension_numbers = #tpu.dot_dimension_numbers<[1], [0], [0], [1], [0, 0, 1, 1], [], []>} : vector<8x32xbf16>, vector<32x16xbf16>, vector<8x16xf32> -> vector<8x16xf32>
    %42 = arith.addf %39, %41 : vector<8x16xf32>
    %c0_22 = arith.constant 0 : index
    %c0_23 = arith.constant 0 : index
    %43 = vector.load %arg9[%c0_22, %c0_23] : memref<32x16xbf16, #tpu.memory_space<vmem>>, vector<32x16xbf16>
    %cst_24 = arith.constant dense<0.000000e+00> : vector<8x16xf32>
    %44 = tpu.matmul %35, %43, %cst_24 {dimension_numbers = #tpu.dot_dimension_numbers<[1], [0], [0], [1], [0, 0, 1, 1], [], []>} : vector<8x32xbf16>, vector<32x16xbf16>, vector<8x16xf32> -> vector<8x16xf32>
    %45 = arith.addf %42, %44 : vector<8x16xf32>
    %c0_25 = arith.constant 0 : index
    %c0_26 = arith.constant 0 : index
    %46 = vector.load %arg10[%c0_25, %c0_26] : memref<32x16xbf16, #tpu.memory_space<vmem>>, vector<32x16xbf16>
    %cst_27 = arith.constant dense<0.000000e+00> : vector<8x16xf32>
    %47 = tpu.matmul %37, %46, %cst_27 {dimension_numbers = #tpu.dot_dimension_numbers<[1], [0], [0], [1], [0, 0, 1, 1], [], []>} : vector<8x32xbf16>, vector<32x16xbf16>, vector<8x16xf32> -> vector<8x16xf32>
    %48 = arith.addf %45, %47 : vector<8x16xf32>
    %c0_28 = arith.constant 0 : index
    %c0_29 = arith.constant 0 : index
    %49 = vector.load %arg11[%c0_28, %c0_29] : memref<1x16xf32, #tpu.memory_space<vmem>>, vector<1x16xf32>
    %50 = vector.broadcast %49 : vector<1x16xf32> to vector<8x16xf32>
    %51 = arith.addf %48, %50 : vector<8x16xf32>
    %cst_30 = arith.constant 0.000000e+00 : f32
    %52 = vector.broadcast %cst_30 : f32 to vector<8x16xf32>
    %53 = arith.subf %52, %51 : vector<8x16xf32>
    %54 = math.exp %53 : vector<8x16xf32>
    %cst_31 = arith.constant 1.000000e+00 : f32
    %55 = vector.broadcast %cst_31 : f32 to vector<8x16xf32>
    %56 = arith.addf %55, %54 : vector<8x16xf32>
    %57 = tpu.reciprocal %56 {approx = true} : vector<8x16xf32> -> vector<8x16xf32>
    %c0_32 = arith.constant 0 : index
    %c0_33 = arith.constant 0 : index
    %58 = vector.load %arg12[%c0_32, %c0_33] : memref<1x16xf32, #tpu.memory_space<vmem>>, vector<1x16xf32>
    %59 = vector.broadcast %58 : vector<1x16xf32> to vector<8x16xf32>
    %60 = arith.mulf %57, %59 : vector<8x16xf32>
    %cst_34 = arith.constant dense<0.000000e+00> : vector<8xf32>
    %61 = vector.multi_reduction <add>, %60, %cst_34 [1] : vector<8x16xf32> to vector<8xf32>
    %62 = vector.shape_cast %61 : vector<8xf32> to vector<8x1xf32>
    %c0_35 = arith.constant 0 : index
    %c0_36 = arith.constant 0 : index
    %63 = memref.load %arg13[%c0_35, %c0_36] : memref<1x1xf32, #tpu.memory_space<smem>>
    %64 = vector.broadcast %63 : f32 to vector<8x1xf32>
    %65 = arith.addf %62, %64 : vector<8x1xf32>
    %66 = vector.shape_cast %65 : vector<8x1xf32> to vector<8x1xf32>
    %67 = vector.broadcast %66 : vector<8x1xf32> to vector<8x128xf32>
    %c0_37 = arith.constant 0 : index
    %c0_38 = arith.constant 0 : index
    %68 = vector.load %arg14[%c0_37, %c0_38] : memref<8x128xf32, #tpu.memory_space<vmem>>, vector<8x128xf32>
    tpu.vector_store %arg14[%c0_37, %c0_38], %67 {strides = array<i32>} : memref<8x128xf32, #tpu.memory_space<vmem>>, vector<8x128xf32>,
    return
  }
  func.func @transform_0(%arg0: i32) -> (i32, i32) {
    %c0_i32 = arith.constant 0 : i32
    %c0_i32_0 = arith.constant 0 : i32
    return %arg0, %c0_i32 : i32, i32
  }
  func.func @transform_1(%arg0: i32) -> (i32, i32) {
    %c0_i32 = arith.constant 0 : i32
    %c0_i32_0 = arith.constant 0 : i32
    return %arg0, %c0_i32 : i32, i32
  }
  func.func @transform_2(%arg0: i32) -> (i32, i32) {
    %c0_i32 = arith.constant 0 : i32
    %c0_i32_0 = arith.constant 0 : i32
    %c0_i32_1 = arith.constant 0 : i32
    return %c0_i32, %c0_i32_0 : i32, i32
  }
  func.func @transform_3(%arg0: i32) -> (i32, i32) {
    %c0_i32 = arith.constant 0 : i32
    %c0_i32_0 = arith.constant 0 : i32
    %c0_i32_1 = arith.constant 0 : i32
    return %c0_i32, %c0_i32_0 : i32, i32
  }
  func.func @transform_4(%arg0: i32) -> (i32, i32) {
    %c0_i32 = arith.constant 0 : i32
    %c0_i32_0 = arith.constant 0 : i32
    %c0_i32_1 = arith.constant 0 : i32
    return %c0_i32, %c0_i32_0 : i32, i32
  }
  func.func @transform_5(%arg0: i32) -> (i32, i32) {
    %c0_i32 = arith.constant 0 : i32
    %c0_i32_0 = arith.constant 0 : i32
    %c0_i32_1 = arith.constant 0 : i32
    return %c0_i32, %c0_i32_0 : i32, i32
  }
  func.func @transform_6(%arg0: i32) -> (i32, i32) {
    %c0_i32 = arith.constant 0 : i32
    %c0_i32_0 = arith.constant 0 : i32
    %c0_i32_1 = arith.constant 0 : i32
    return %c0_i32, %c0_i32_0 : i32, i32
  }
  func.func @transform_7(%arg0: i32) -> (i32, i32) {
    %c0_i32 = arith.constant 0 : i32
    %c0_i32_0 = arith.constant 0 : i32
    %c0_i32_1 = arith.constant 0 : i32
    return %c0_i32, %c0_i32_0 : i32, i32
  }
  func.func @transform_8(%arg0: i32) -> (i32, i32) {
    %c0_i32 = arith.constant 0 : i32
    %c0_i32_0 = arith.constant 0 : i32
    %c0_i32_1 = arith.constant 0 : i32
    return %c0_i32, %c0_i32_0 : i32, i32
  }
  func.func @transform_9(%arg0: i32) -> (i32, i32) {
    %c0_i32 = arith.constant 0 : i32
    %c0_i32_0 = arith.constant 0 : i32
    %c0_i32_1 = arith.constant 0 : i32
    return %c0_i32, %c0_i32_0 : i32, i32
  }
  func.func @transform_10(%arg0: i32) -> (i32, i32) {
    %c0_i32 = arith.constant 0 : i32
    %c0_i32_0 = arith.constant 0 : i32
    %c0_i32_1 = arith.constant 0 : i32
    return %c0_i32, %c0_i32_0 : i32, i32
  }
  func.func @transform_11(%arg0: i32) -> (i32, i32) {
    %c0_i32 = arith.constant 0 : i32
    %c0_i32_0 = arith.constant 0 : i32
    %c0_i32_1 = arith.constant 0 : i32
    return %c0_i32, %c0_i32_0 : i32, i32
  }
  func.func @transform_12(%arg0: i32) -> (i32, i32) {
    %c0_i32 = arith.constant 0 : i32
    %c0_i32_0 = arith.constant 0 : i32
    %c0_i32_1 = arith.constant 0 : i32
    return %c0_i32, %c0_i32_0 : i32, i32
  }
  func.func @transform_13(%arg0: i32) -> (i32, i32) {
    %c0_i32 = arith.constant 0 : i32
    %c0_i32_0 = arith.constant 0 : i32
    return %arg0, %c0_i32 : i32, i32
  }
}

</mosaic_0001>

<llo_original>
// kernel: tpu_custom_call.1
$region0: #{tpu_custom_call.1}
  #allocation0 [shape = 'u32[]', space=smem, size = 0x4, offset = 0x4, fixed_abs, tag = 'smem constant byte address 0x4 - core index']
  #allocation1 [shape = 'u32[144,128]{1,0:T(1,128)}', space=vmem, size = 0x12000, scoped, tag = 'internal scratch']
  #allocation2 [shape = 'f32[1,1]{1,0:T(1,128)S(6)}', space=smem, size = 0x200, scoped, tag = 'scoped memory for tpu_custom_call.1']
  %s0 = inlined_call_operand.vmem [shape: bf16[32,64], index: 0, kind: input, shape index: {}]
  %s1 = inlined_call_operand.vmem [shape: bf16[32,48], index: 1, kind: input, shape index: {}]
  %s2 = inlined_call_operand.vmem [shape: bf16[64,32], index: 2, kind: input, shape index: {}]
  %s3 = inlined_call_operand.vmem [shape: f32[1,32], index: 3, kind: input, shape index: {}]
  %s4 = inlined_call_operand.vmem [shape: bf16[48,32], index: 4, kind: input, shape index: {}]
  %s5 = inlined_call_operand.vmem [shape: f32[1,32], index: 5, kind: input, shape index: {}]
  %s6 = inlined_call_operand.vmem [shape: bf16[32,16], index: 6, kind: input, shape index: {}]
  %s7 = inlined_call_operand.vmem [shape: bf16[32,16], index: 7, kind: input, shape index: {}]
  %s8 = inlined_call_operand.vmem [shape: bf16[32,16], index: 8, kind: input, shape index: {}]
  %s9 = inlined_call_operand.vmem [shape: bf16[32,16], index: 9, kind: input, shape index: {}]
  %s10 = inlined_call_operand.vmem [shape: f32[1,16], index: 10, kind: input, shape index: {}]
  %s11 = inlined_call_operand.vmem [shape: f32[1,16], index: 11, kind: input, shape index: {}]
  %s12 = inlined_call_operand.<no memory space> [shape: f32[1,1], index: 12, kind: input, shape index: {}]
  %s13 = inlined_call_operand.hbm [shape: f32[16,128], index: 13, kind: output, shape index: {}]
  %s14 = sld [smem:[#allocation0]]
  $region85: #{tpu_custom_call.1} parent=0
    _
  %s16 = ssub.s32 1, %s14
  %s17 = scalar_select 0, %s16, %s14
  %18 = sst [smem:[#allocation2]] %s12
  $region1: #{tpu_custom_call.1} parent=0
    #allocation3 [shape = 'u8[8192]{0}', space=vmem, size = 0x2000, scoped, tag = 'output window, operand 0']
    #allocation4 [shape = 's32[2]{0}', space=sflag, size = 0x8, scoped, tag = 'scoped memory for tpu_custom_call.1']
    %19 = vsyncpa [#allocation4], 0
    %s20 = scalar_lea.sflag [#allocation4], 1
    %21 = vsyncpa %s20, 0
    loop: start=0, step=1, limit=4
    $region2: #{tpu_custom_call.1} parent=1 // loop_pre_header
      _
    $region3: #{tpu_custom_call.1} parent=1 // loop_header
      %s23 = sphi 0, %s27
      %p24 = scmp.ge.s32.totalorder %s23, 4
      %s33 = sphi 0, %s35
      %s36 = sphi 0, %s33
      %s37 = sphi 0, %s36
      %s53 = sphi 0, %s37
      %s59 = sphi 0, %s61
      %s62 = sphi 0, %s59
      %s63 = sphi 0, %s62
      %s79 = sphi 0, %s63
      %s83 = sphi 0, %s83
      %s85 = sphi 0, %s83
      %s86 = sphi 0, %s85
      %s100 = sphi 0, %s86
      %s104 = sphi 0, %s104
      %s106 = sphi 0, %s104
      %s107 = sphi 0, %s106
      %s121 = sphi 0, %s107
      %s125 = sphi 0, %s125
      %s127 = sphi 0, %s125
      %s128 = sphi 0, %s127
      %s142 = sphi 0, %s128
      %s146 = sphi 0, %s146
      %s148 = sphi 0, %s146
      %s149 = sphi 0, %s148
      %s163 = sphi 0, %s149
      %s167 = sphi 0, %s167
      %s169 = sphi 0, %s167
      %s170 = sphi 0, %s169
      %s184 = sphi 0, %s170
      %s188 = sphi 0, %s188
      %s190 = sphi 0, %s188
      %s191 = sphi 0, %s190
      %s205 = sphi 0, %s191
      %s209 = sphi 0, %s209
      %s211 = sphi 0, %s209
      %s212 = sphi 0, %s211
      %s226 = sphi 0, %s212
      %s230 = sphi 0, %s230
      %s232 = sphi 0, %s230
      %s233 = sphi 0, %s232
      %s247 = sphi 0, %s233
      %s251 = sphi 0, %s251
      %s253 = sphi 0, %s251
      %s254 = sphi 0, %s253
      %s268 = sphi 0, %s254
      %s272 = sphi 0, %s272
      %s274 = sphi 0, %s272
      %s275 = sphi 0, %s274
      %s289 = sphi 0, %s275
      %s293 = sphi 0, %s293
      %s295 = sphi 0, %s293
      %s296 = sphi 0, %s295
      %s310 = sphi 0, %s296
      %s316 = sphi 0, %s318
      %s319 = sphi 0, %s316
      %s320 = sphi 0, %s319
      %s336 = sphi 0, %s320
    $region4: #{tpu_custom_call.1} parent=1 // loop_header_branch
      %26 = sbr.rel (%p24) target = $region8
    $region5: #{tpu_custom_call.1} parent=1 // loop_body
      %s28 = ssub.s32 %s23, 1
      %s29 = ssub.s32 %s23, 2
      %s30 = sadd.s32 %s23, 1
      %s31 = ssub.s32 %s23, %s30
      %p32 = scmp.eq.s32.totalorder %s31, 0
      %s34 = sadd.s32 %s33, 1
      %s35 = scalar_select %p32, %s33, %s34
      %p38 = pneg %p32
      %p39 = scmp.eq.s32.totalorder %s23, 1
      %p40 = por %p38, %p39
      %p41 = scmp.ne.s32.totalorder %s33, %s36
      %p42 = scmp.eq.s32.totalorder %s23, 0
      %p43 = por %p41, %p42
      %p44 = scmp.ne.s32.totalorder %s33, %s36
      %p45 = scmp.eq.s32.totalorder %s28, 1
      %p46 = por %p44, %p45
      %p47 = scmp.ne.s32.totalorder %s36, %s37
      %p48 = scmp.eq.s32.totalorder %s28, 0
      %p49 = por %p47, %p48
      %p50 = scmp.ne.s32.totalorder %s36, %s37
      %p51 = scmp.eq.s32.totalorder %s29, 1
      %p52 = por %p50, %p51
      %p54 = scmp.ne.s32.totalorder %s37, %s53
      %p55 = scmp.eq.s32.totalorder %s29, 0
      %p56 = por %p54, %p55
      %s57 = ssub.s32 %s23, %s30
      %p58 = scmp.eq.s32.totalorder %s57, 0
      %s60 = sadd.s32 %s59, 1
      %s61 = scalar_select %p58, %s59, %s60
      %p64 = pneg %p58
      %p65 = scmp.eq.s32.totalorder %s23, 1
      %p66 = por %p64, %p65
      %p67 = scmp.ne.s32.totalorder %s59, %s62
      %p68 = scmp.eq.s32.totalorder %s23, 0
      %p69 = por %p67, %p68
      %p70 = scmp.ne.s32.totalorder %s59, %s62
      %p71 = scmp.eq.s32.totalorder %s28, 1
      %p72 = por %p70, %p71
      %p73 = scmp.ne.s32.totalorder %s62, %s63
      %p74 = scmp.eq.s32.totalorder %s28, 0
      %p75 = por %p73, %p74
      %p76 = scmp.ne.s32.totalorder %s62, %s63
      %p77 = scmp.eq.s32.totalorder %s29, 1
      %p78 = por %p76, %p77
      %p80 = scmp.ne.s32.totalorder %s63, %s79
      %p81 = scmp.eq.s32.totalorder %s29, 0
      %p82 = por %p80, %p81
      %s84 = sadd.s32 %s83, 1
      %p87 = scmp.eq.s32.totalorder %s23, 1
      %p88 = scmp.ne.s32.totalorder %s83, %s85
      %p89 = scmp.eq.s32.totalorder %s23, 0
      %p90 = por %p88, %p89
      %p91 = scmp.ne.s32.totalorder %s83, %s85
      %p92 = scmp.eq.s32.totalorder %s28, 1
      %p93 = por %p91, %p92
      %p94 = scmp.ne.s32.totalorder %s85, %s86
      %p95 = scmp.eq.s32.totalorder %s28, 0
      %p96 = por %p94, %p95
      %p97 = scmp.ne.s32.totalorder %s85, %s86
      %p98 = scmp.eq.s32.totalorder %s29, 1
      %p99 = por %p97, %p98
      %p101 = scmp.ne.s32.totalorder %s86, %s100
      %p102 = scmp.eq.s32.totalorder %s29, 0
      %p103 = por %p101, %p102
      %s105 = sadd.s32 %s104, 1
      %p108 = scmp.eq.s32.totalorder %s23, 1
      %p109 = scmp.ne.s32.totalorder %s104, %s106
      %p110 = scmp.eq.s32.totalorder %s23, 0
      %p111 = por %p109, %p110
      %p112 = scmp.ne.s32.totalorder %s104, %s106
      %p113 = scmp.eq.s32.totalorder %s28, 1
      %p114 = por %p112, %p113
      %p115 = scmp.ne.s32.totalorder %s106, %s107
      %p116 = scmp.eq.s32.totalorder %s28, 0
      %p117 = por %p115, %p116
      %p118 = scmp.ne.s32.totalorder %s106, %s107
      %p119 = scmp.eq.s32.totalorder %s29, 1
      %p120 = por %p118, %p119
      %p122 = scmp.ne.s32.totalorder %s107, %s121
      %p123 = scmp.eq.s32.totalorder %s29, 0
      %p124 = por %p122, %p123
      %s126 = sadd.s32 %s125, 1
      %p129 = scmp.eq.s32.totalorder %s23, 1
      %p130 = scmp.ne.s32.totalorder %s125, %s127
      %p131 = scmp.eq.s32.totalorder %s23, 0
      %p132 = por %p130, %p131
      %p133 = scmp.ne.s32.totalorder %s125, %s127
      %p134 = scmp.eq.s32.totalorder %s28, 1
      %p135 = por %p133, %p134
      %p136 = scmp.ne.s32.totalorder %s127, %s128
      %p137 = scmp.eq.s32.totalorder %s28, 0
      %p138 = por %p136, %p137
      %p139 = scmp.ne.s32.totalorder %s127, %s128
      %p140 = scmp.eq.s32.totalorder %s29, 1
      %p141 = por %p139, %p140
      %p143 = scmp.ne.s32.totalorder %s128, %s142
      %p144 = scmp.eq.s32.totalorder %s29, 0
      %p145 = por %p143, %p144
      %s147 = sadd.s32 %s146, 1
      %p150 = scmp.eq.s32.totalorder %s23, 1
      %p151 = scmp.ne.s32.totalorder %s146, %s148
      %p152 = scmp.eq.s32.totalorder %s23, 0
      %p153 = por %p151, %p152
      %p154 = scmp.ne.s32.totalorder %s146, %s148
      %p155 = scmp.eq.s32.totalorder %s28, 1
      %p156 = por %p154, %p155
      %p157 = scmp.ne.s32.totalorder %s148, %s149
      %p158 = scmp.eq.s32.totalorder %s28, 0
      %p159 = por %p157, %p158
      %p160 = scmp.ne.s32.totalorder %s148, %s149
      %p161 = scmp.eq.s32.totalorder %s29, 1
      %p162 = por %p160, %p161
      %p164 = scmp.ne.s32.totalorder %s149, %s163
      %p165 = scmp.eq.s32.totalorder %s29, 0
      %p166 = por %p164, %p165
      %s168 = sadd.s32 %s167, 1
      %p171 = scmp.eq.s32.totalorder %s23, 1
      %p172 = scmp.ne.s32.totalorder %s167, %s169
      %p173 = scmp.eq.s32.totalorder %s23, 0
      %p174 = por %p172, %p173
      %p175 = scmp.ne.s32.totalorder %s167, %s169
      %p176 = scmp.eq.s32.totalorder %s28, 1
      %p177 = por %p175, %p176
      %p178 = scmp.ne.s32.totalorder %s169, %s170
      %p179 = scmp.eq.s32.totalorder %s28, 0
      %p180 = por %p178, %p179
      %p181 = scmp.ne.s32.totalorder %s169, %s170
      %p182 = scmp.eq.s32.totalorder %s29, 1
      %p183 = por %p181, %p182
      %p185 = scmp.ne.s32.totalorder %s170, %s184
      %p186 = scmp.eq.s32.totalorder %s29, 0
      %p187 = por %p185, %p186
      %s189 = sadd.s32 %s188, 1
      %p192 = scmp.eq.s32.totalorder %s23, 1
      %p193 = scmp.ne.s32.totalorder %s188, %s190
      %p194 = scmp.eq.s32.totalorder %s23, 0
      %p195 = por %p193, %p194
      %p196 = scmp.ne.s32.totalorder %s188, %s190
      %p197 = scmp.eq.s32.totalorder %s28, 1
      %p198 = por %p196, %p197
      %p199 = scmp.ne.s32.totalorder %s190, %s191
      %p200 = scmp.eq.s32.totalorder %s28, 0
      %p201 = por %p199, %p200
      %p202 = scmp.ne.s32.totalorder %s190, %s191
      %p203 = scmp.eq.s32.totalorder %s29, 1
      %p204 = por %p202, %p203
      %p206 = scmp.ne.s32.totalorder %s191, %s205
      %p207 = scmp.eq.s32.totalorder %s29, 0
      %p208 = por %p206, %p207
      %s210 = sadd.s32 %s209, 1
      %p213 = scmp.eq.s32.totalorder %s23, 1
      %p214 = scmp.ne.s32.totalorder %s209, %s211
      %p215 = scmp.eq.s32.totalorder %s23, 0
      %p216 = por %p214, %p215
      %p217 = scmp.ne.s32.totalorder %s209, %s211
      %p218 = scmp.eq.s32.totalorder %s28, 1
      %p219 = por %p217, %p218
      %p220 = scmp.ne.s32.totalorder %s211, %s212
      %p221 = scmp.eq.s32.totalorder %s28, 0
      %p222 = por %p220, %p221
      %p223 = scmp.ne.s32.totalorder %s211, %s212
      %p224 = scmp.eq.s32.totalorder %s29, 1
      %p225 = por %p223, %p224
      %p227 = scmp.ne.s32.totalorder %s212, %s226
      %p228 = scmp.eq.s32.totalorder %s29, 0
      %p229 = por %p227, %p228
      %s231 = sadd.s32 %s230, 1
      %p234 = scmp.eq.s32.totalorder %s23, 1
      %p235 = scmp.ne.s32.totalorder %s230, %s232
      %p236 = scmp.eq.s32.totalorder %s23, 0
      %p237 = por %p235, %p236
      %p238 = scmp.ne.s32.totalorder %s230, %s232
      %p239 = scmp.eq.s32.totalorder %s28, 1
      %p240 = por %p238, %p239
      %p241 = scmp.ne.s32.totalorder %s232, %s233
      %p242 = scmp.eq.s32.totalorder %s28, 0
      %p243 = por %p241, %p242
      %p244 = scmp.ne.s32.totalorder %s232, %s233
      %p245 = scmp.eq.s32.totalorder %s29, 1
      %p246 = por %p244, %p245
      %p248 = scmp.ne.s32.totalorder %s233, %s247
      %p249 = scmp.eq.s32.totalorder %s29, 0
      %p250 = por %p248, %p249
      %s252 = sadd.s32 %s251, 1
      %p255 = scmp.eq.s32.totalorder %s23, 1
      %p256 = scmp.ne.s32.totalorder %s251, %s253
      %p257 = scmp.eq.s32.totalorder %s23, 0
      %p258 = por %p256, %p257
      %p259 = scmp.ne.s32.totalorder %s251, %s253
      %p260 = scmp.eq.s32.totalorder %s28, 1
      %p261 = por %p259, %p260
      %p262 = scmp.ne.s32.totalorder %s253, %s254
      %p263 = scmp.eq.s32.totalorder %s28, 0
      %p264 = por %p262, %p263
      %p265 = scmp.ne.s32.totalorder %s253, %s254
      %p266 = scmp.eq.s32.totalorder %s29, 1
      %p267 = por %p265, %p266
      %p269 = scmp.ne.s32.totalorder %s254, %s268
      %p270 = scmp.eq.s32.totalorder %s29, 0
      %p271 = por %p269, %p270
      %s273 = sadd.s32 %s272, 1
      %p276 = scmp.eq.s32.totalorder %s23, 1
      %p277 = scmp.ne.s32.totalorder %s272, %s274
      %p278 = scmp.eq.s32.totalorder %s23, 0
      %p279 = por %p277, %p278
      %p280 = scmp.ne.s32.totalorder %s272, %s274
      %p281 = scmp.eq.s32.totalorder %s28, 1
      %p282 = por %p280, %p281
      %p283 = scmp.ne.s32.totalorder %s274, %s275
      %p284 = scmp.eq.s32.totalorder %s28, 0
      %p285 = por %p283, %p284
      %p286 = scmp.ne.s32.totalorder %s274, %s275
      %p287 = scmp.eq.s32.totalorder %s29, 1
      %p288 = por %p286, %p287
      %p290 = scmp.ne.s32.totalorder %s275, %s289
      %p291 = scmp.eq.s32.totalorder %s29, 0
      %p292 = por %p290, %p291
      %s294 = sadd.s32 %s293, 1
      %p297 = scmp.eq.s32.totalorder %s23, 1
      %p298 = scmp.ne.s32.totalorder %s293, %s295
      %p299 = scmp.eq.s32.totalorder %s23, 0
      %p300 = por %p298, %p299
      %p301 = scmp.ne.s32.totalorder %s293, %s295
      %p302 = scmp.eq.s32.totalorder %s28, 1
      %p303 = por %p301, %p302
      %p304 = scmp.ne.s32.totalorder %s295, %s296
      %p305 = scmp.eq.s32.totalorder %s28, 0
      %p306 = por %p304, %p305
      %p307 = scmp.ne.s32.totalorder %s295, %s296
      %p308 = scmp.eq.s32.totalorder %s29, 1
      %p309 = por %p307, %p308
      %p311 = scmp.ne.s32.totalorder %s296, %s310
      %p312 = scmp.eq.s32.totalorder %s29, 0
      %p313 = por %p311, %p312
      %s314 = ssub.s32 %s23, %s30
      %p315 = scmp.eq.s32.totalorder %s314, 0
      %s317 = sadd.s32 %s316, 1
      %s318 = scalar_select %p315, %s316, %s317
      %p321 = pneg %p315
      %p322 = scmp.eq.s32.totalorder %s23, 1
      %p323 = por %p321, %p322
      %p324 = scmp.ne.s32.totalorder %s316, %s319
      %p325 = scmp.eq.s32.totalorder %s23, 0
      %p326 = por %p324, %p325
      %p327 = scmp.ne.s32.totalorder %s316, %s319
      %p328 = scmp.eq.s32.totalorder %s28, 1
      %p329 = por %p327, %p328
      %p330 = scmp.ne.s32.totalorder %s319, %s320
      %p331 = scmp.eq.s32.totalorder %s28, 0
      %p332 = por %p330, %p331
      %p333 = scmp.ne.s32.totalorder %s319, %s320
      %p334 = scmp.eq.s32.totalorder %s29, 1
      %p335 = por %p333, %p334
      %p337 = scmp.ne.s32.totalorder %s320, %s336
      %p338 = scmp.eq.s32.totalorder %s29, 0
      %p339 = por %p337, %p338
      %p340 = scmp.le.s32.totalorder 1, %s23
      %p341 = scmp.lt.s32.totalorder %s23, 3
      %p342 = pnand %p340, %p341
      %p343 = pneg %p342
      // Predicated region
      $region9: #{tpu_custom_call.1} parent=5 // pred_check
        _
      $region10: #{tpu_custom_call.1} parent=5 // pred_check_branch
        %345 = sbr.rel (%p342) target = $region12
      $region11: #{tpu_custom_call.1} parent=5 // pred_region
        %s346 = ssub.s32 %s23, 1
        // Predicated region
        $region13: #{tpu_custom_call.1} parent=11 // pred_check
          %p347 = pneg %p96
        $region14: #{tpu_custom_call.1} parent=11 // pred_check_branch
          %349 = sbr.rel (%p347) target = $region16
        $region15: #{tpu_custom_call.1} parent=11 // pred_region
          _
        $region16: #{tpu_custom_call.1} parent=11 // pred_fallthru
          _
        // Predicated region
        $region17: #{tpu_custom_call.1} parent=11 // pred_check
          %p350 = pneg %p117
        $region18: #{tpu_custom_call.1} parent=11 // pred_check_branch
          %352 = sbr.rel (%p350) target = $region20
        $region19: #{tpu_custom_call.1} parent=11 // pred_region
          _
        $region20: #{tpu_custom_call.1} parent=11 // pred_fallthru
          _
        // Predicated region
        $region21: #{tpu_custom_call.1} parent=11 // pred_check
          %p353 = pneg %p138
        $region22: #{tpu_custom_call.1} parent=11 // pred_check_branch
          %355 = sbr.rel (%p353) target = $region24
        $region23: #{tpu_custom_call.1} parent=11 // pred_region
          _
        $region24: #{tpu_custom_call.1} parent=11 // pred_fallthru
          _
        // Predicated region
        $region25: #{tpu_custom_call.1} parent=11 // pred_check
          %p356 = pneg %p159
        $region26: #{tpu_custom_call.1} parent=11 // pred_check_branch
          %358 = sbr.rel (%p356) target = $region28
        $region27: #{tpu_custom_call.1} parent=11 // pred_region
          _
        $region28: #{tpu_custom_call.1} parent=11 // pred_fallthru
          _
        // Predicated region
        $region29: #{tpu_custom_call.1} parent=11 // pred_check
          %p359 = pneg %p180
        $region30: #{tpu_custom_call.1} parent=11 // pred_check_branch
          %361 = sbr.rel (%p359) target = $region32
        $region31: #{tpu_custom_call.1} parent=11 // pred_region
          _
        $region32: #{tpu_custom_call.1} parent=11 // pred_fallthru
          _
        // Predicated region
        $region33: #{tpu_custom_call.1} parent=11 // pred_check
          %p362 = pneg %p201
        $region34: #{tpu_custom_call.1} parent=11 // pred_check_branch
          %364 = sbr.rel (%p362) target = $region36
        $region35: #{tpu_custom_call.1} parent=11 // pred_region
          _
        $region36: #{tpu_custom_call.1} parent=11 // pred_fallthru
          _
        // Predicated region
        $region37: #{tpu_custom_call.1} parent=11 // pred_check
          %p365 = pneg %p222
        $region38: #{tpu_custom_call.1} parent=11 // pred_check_branch
          %367 = sbr.rel (%p365) target = $region40
        $region39: #{tpu_custom_call.1} parent=11 // pred_region
          _
        $region40: #{tpu_custom_call.1} parent=11 // pred_fallthru
          _
        // Predicated region
        $region41: #{tpu_custom_call.1} parent=11 // pred_check
          %p368 = pneg %p243
        $region42: #{tpu_custom_call.1} parent=11 // pred_check_branch
          %370 = sbr.rel (%p368) target = $region44
        $region43: #{tpu_custom_call.1} parent=11 // pred_region
          _
        $region44: #{tpu_custom_call.1} parent=11 // pred_fallthru
          _
        // Predicated region
        $region45: #{tpu_custom_call.1} parent=11 // pred_check
          %p371 = pneg %p264
        $region46: #{tpu_custom_call.1} parent=11 // pred_check_branch
          %373 = sbr.rel (%p371) target = $region48
        $region47: #{tpu_custom_call.1} parent=11 // pred_region
          _
        $region48: #{tpu_custom_call.1} parent=11 // pred_fallthru
          _
        // Predicated region
        $region49: #{tpu_custom_call.1} parent=11 // pred_check
          %p374 = pneg %p285
        $region50: #{tpu_custom_call.1} parent=11 // pred_check_branch
          %376 = sbr.rel (%p374) target = $region52
        $region51: #{tpu_custom_call.1} parent=11 // pred_region
          _
        $region52: #{tpu_custom_call.1} parent=11 // pred_fallthru
          _
        // Predicated region
        $region53: #{tpu_custom_call.1} parent=11 // pred_check
          %p377 = pneg %p306
        $region54: #{tpu_custom_call.1} parent=11 // pred_check_branch
          %379 = sbr.rel (%p377) target = $region56
        $region55: #{tpu_custom_call.1} parent=11 // pred_region
          _
        $region56: #{tpu_custom_call.1} parent=11 // pred_fallthru
          _
      $region12: #{tpu_custom_call.1} parent=5 // pred_fallthru
        _
      %p380 = scmp.lt.s32.totalorder %s23, 2
      // Predicated region
      $region57: #{tpu_custom_call.1} parent=5 // pred_check
        %p381 = pneg %p380
      $region58: #{tpu_custom_call.1} parent=5 // pred_check_branch
        %383 = sbr.rel (%p381) target = $region60
      $region59: #{tpu_custom_call.1} parent=5 // pred_region
        // Predicated region
        $region61: #{tpu_custom_call.1} parent=59 // pred_check
          %p384 = pneg %p43
        $region62: #{tpu_custom_call.1} parent=59 // pred_check_branch
          %386 = sbr.rel (%p384) target = $region64
        $region63: #{tpu_custom_call.1} parent=59 // pred_region
          %s387 = smul.u32 2, %s23
          %p388 = scmp.lt.s32.totalorder %s387, 3
          %s389 = scalar_select %p388, %s387, 3
          %s390 = smul.addr %s389, 4
          %s391 = scalar_lea.vmem %s0, %s390
          %s392 = smul.u32 2, %s23
        $region64: #{tpu_custom_call.1} parent=59 // pred_fallthru
          _
        // Predicated region
        $region65: #{tpu_custom_call.1} parent=59 // pred_check
          %p393 = pneg %p69
        $region66: #{tpu_custom_call.1} parent=59 // pred_check_branch
          %395 = sbr.rel (%p393) target = $region68
        $region67: #{tpu_custom_call.1} parent=59 // pred_region
          %s396 = smul.u32 2, %s23
          %p397 = scmp.lt.s32.totalorder %s396, 3
          %s398 = scalar_select %p397, %s396, 3
          %s399 = smul.addr %s398, 4
          %s400 = scalar_lea.vmem %s1, %s399
          %s401 = smul.u32 2, %s23
        $region68: #{tpu_custom_call.1} parent=59 // pred_fallthru
          _
      $region60: #{tpu_custom_call.1} parent=5 // pred_fallthru
        _
      %p402 = scmp.le.s32.totalorder 1, %s23
      %p403 = scmp.lt.s32.totalorder %s23, 3
      %p404 = pnand %p402, %p403
      %p405 = pneg %p404
      // Predicated region
      $region69: #{tpu_custom_call.1} parent=5 // pred_check
        _
      $region70: #{tpu_custom_call.1} parent=5 // pred_check_branch
        %407 = sbr.rel (%p404) target = $region72
      $region71: #{tpu_custom_call.1} parent=5 // pred_region
        %s408 = ssub.s32 %s23, 1
        %s409 = smul.u32 2, %s28
        %p410 = scmp.lt.s32.totalorder %s409, 3
        %s411 = scalar_select %p410, %s409, 3
        %s412 = smul.addr %s411, 4
        %s413 = scalar_lea.vmem %s0, %s412
        %p414 = pneg %p49
        %p415 = pneg %p46
        %s416 = smul.u32 2, %s28
        %p417 = scmp.lt.s32.totalorder %s416, 3
        %s418 = scalar_select %p417, %s416, 3
        %s419 = smul.addr %s418, 4
        %s420 = scalar_lea.vmem %s1, %s419
        %p421 = pneg %p75
        %p422 = pneg %p72
        %p423 = pneg %p96
        %p424 = pneg %p93
        %p425 = pneg %p117
        %p426 = pneg %p114
        %p427 = pneg %p138
        %p428 = pneg %p135
        %p429 = pneg %p159
        %p430 = pneg %p156
        %p431 = pneg %p180
        %p432 = pneg %p177
        %p433 = pneg %p201
        %p434 = pneg %p198
        %p435 = pneg %p222
        %p436 = pneg %p219
        %p437 = pneg %p243
        %p438 = pneg %p240
        %p439 = pneg %p264
        %p440 = pneg %p261
        %p441 = pneg %p285
        %p442 = pneg %p282
        %p443 = pneg %p306
        %p444 = pneg %p303
        %p445 = pneg %p332
        %p446 = pneg %p329
        %s447 = sand.u32 %s319, 1
        %s448 = scalar_lea.sflag [#allocation4], %s447
        %s449 = sand.u32 %s319, 1
        %s450 = smul.addr %s449, 8
        %s451 = scalar_lea.vmem [#allocation3], %s450
        %s452 = smul.u32 2, %s28
        %p453 = scmp.lt.s32.totalorder %s452, 3
        %s454 = scalar_select %p453, %s452, 3
        %s455 = smul.addr %s454, 4
        %s456 = scalar_lea.vmem %s0, %s455
        %s457 = smul.u32 2, %s28
        %s458 = smul.u32 2, %s28
        %p459 = scmp.lt.s32.totalorder %s458, 3
        %s460 = scalar_select %p459, %s458, 3
        %s461 = smul.addr %s460, 4
        %s462 = scalar_lea.vmem %s1, %s461
        %s463 = smul.u32 2, %s28
        %v465 = vld [vmem:[%s456] sm:$0xf]
        %v466 = vld [vmem:[%s456 + $0x4] sm:$0xf]
        %v467 = vld [vmem:[%s2] sm:$0xf]
        %v468 = vld [vmem:[%s2 + $0x4] sm:$0xf]
        %v469 = vld [vmem:[%s2 + $0x8] sm:$0xf]
        %v470 = vld [vmem:[%s2 + $0xc] sm:$0xf]
        %v471 = vld [vmem:[%s2 + $0x10] sm:$0xf]
        %v472 = vld [vmem:[%s2 + $0x14] sm:$0xf]
        %v473 = vld [vmem:[%s2 + $0x18] sm:$0xf]
        %v474 = vld [vmem:[%s2 + $0x1c] sm:$0xf]
        %v475 = vld [vmem:[%s3] sm:$0x1]
        %v477 = vlaneseq
        %v478 = vshrl.u32 %v477, 7
        %v479 = vsub.s32 0, %v478
        %v480 = vrot.slane %v475, %v479
        %v484 = vunpack.c.l.b16 %v465
        %v485 = vunpack.c.l.b16 %v466
        %v486 = vpack.c.b16 %v485, %v484
        %v495 = vunpack.c.l.b16 %v467
        %v496 = vunpack.c.l.b16 %v468
        %v497 = vunpack.c.l.b16 %v469
        %v498 = vunpack.c.l.b16 %v470
        %v499 = vunpack.c.l.b16 %v471
        %v500 = vunpack.c.l.b16 %v472
        %v501 = vunpack.c.l.b16 %v473
        %v502 = vunpack.c.l.b16 %v474
        %v503 = vpack.c.b16 %v496, %v495
        %v504 = vpack.c.b16 %v498, %v497
        %v505 = vpack.c.b16 %v500, %v499
        %v506 = vpack.c.b16 %v502, %v501
        %vm511 = vcmask 523264
        %v513 = vsel %vm511, %v486, 0
        %515 = vmatprep.subr.bf16.mxu0 0
        %516 = vmatpush1.bf16.msra.mxu0 0
        %517 = vmatprep.subr.bf16.mxu0 0
        %518 = vmatpush1.bf16.msra.mxu0 0
        %519 = vmatprep.subr.bf16.mxu0 0
        %520 = vmatpush1.bf16.msra.mxu0 0
        %521 = vmatprep.subr.bf16.mxu0 0
        %522 = vmatpush1.bf16.msra.mxu0 0
        %523 = vmatprep.subr.bf16.mxu0 0
        %524 = vmatpush1.bf16.msra.mxu0 %v506
        %525 = vmatprep.subr.bf16.mxu0 0
        %526 = vmatpush1.bf16.msra.mxu0 %v505
        %527 = vmatprep.subr.bf16.mxu0 0
        %528 = vmatpush1.bf16.msra.mxu0 %v504
        %529 = vmatprep.subr.bf16.mxu0 0
        %530 = vmatpush1.bf16.msra.mxu0 %v503
        %531 = vmatprep.subr.bf16.mxu0 0
        %532 = vmatpush2.bf16.msra.mxu0 0
        %533 = vmatprep.subr.bf16.mxu0 0
        %534 = vmatpush2.bf16.msra.mxu0 0
        %535 = vmatprep.subr.bf16.mxu0 0
        %536 = vmatpush2.bf16.msra.mxu0 0
        %537 = vmatprep.subr.bf16.mxu0 0
        %538 = vmatpush2.bf16.msra.mxu0 0
        %539 = vmatprep.subr.bf16.mxu0 0
        %540 = vmatpush2.bf16.msra.mxu0 0
        %541 = vmatprep.subr.bf16.mxu0 0
        %542 = vmatpush2.bf16.msra.mxu0 0
        %543 = vmatprep.subr.bf16.mxu0 0
        %544 = vmatpush2.bf16.msra.mxu0 0
        %545 = vmatprep.subr.bf16.mxu0 0
        %546 = vmatpush2.bf16.msra.mxu0 0
        %547 = vmatprep.mubr.bf16.mxu0 0
        %548 = vmatmul.mubr.bf16.gmra.mxu0 %v513
        %v549 = vpop.f32.mrf.mxu0
        %v550 = vadd.f32 %v480, %v549
        %v551 = vpop.f32.mrf.mxu0
        %v552 = vpop.f32.mrf.mxu0
        %v553 = vadd.f32 %v480, %v552
        %v554 = vpop.f32.mrf.mxu0
        %555 = vdwg.mxu0
        %v556 = vsub.f32 0.0, %v550
        %v557 = vsub.f32 0.0, %v553
        %v558 = vmul.f32 %v556, 1.442695
        %v559 = vpow.pop %v558
        %v560 = vmul.f32 %v557, 1.442695
        %v561 = vpow.pop %v560
        %v562 = vadd.f32 %v559, 1.0
        %v563 = vadd.f32 %v561, 1.0
        %v564 = vrcp.pop %v562
        %v565 = vrcp.pop %v563
        %v566 = vld [vmem:[%s462] sm:$0xf]
        %v567 = vld [vmem:[%s462 + $0x4] sm:$0xf]
        %v568 = vld [vmem:[%s4] sm:$0xf]
        %v569 = vld [vmem:[%s4 + $0x4] sm:$0xf]
        %v570 = vld [vmem:[%s4 + $0x8] sm:$0xf]
        %v571 = vld [vmem:[%s4 + $0xc] sm:$0xf]
        %v572 = vld [vmem:[%s4 + $0x10] sm:$0xf]
        %v573 = vld [vmem:[%s4 + $0x14] sm:$0xf]
        %v574 = vld [vmem:[%s5] sm:$0x1]
        %v576 = vlaneseq
        %v577 = vshrl.u32 %v576, 7
        %v578 = vsub.s32 0, %v577
        %v579 = vrot.slane %v574, %v578
        %v583 = vunpack.c.l.b16 %v566
        %v584 = vunpack.c.l.b16 %v567
        %v585 = vpack.c.b16 %v584, %v583
        %v592 = vunpack.c.l.b16 %v568
        %v593 = vunpack.c.l.b16 %v569
        %v594 = vunpack.c.l.b16 %v570
        %v595 = vunpack.c.l.b16 %v571
        %v596 = vunpack.c.l.b16 %v572
        %v597 = vunpack.c.l.b16 %v573
        %v598 = vpack.c.b16 %v593, %v592
        %v599 = vpack.c.b16 %v595, %v594
        %v600 = vpack.c.b16 %v597, %v596
        %vm604 = vcmask 392192
        %v606 = vsel %vm604, %v585, 0
        %608 = vmatprep.subr.bf16.mxu0 0
        %609 = vmatpush1.bf16.msra.mxu0 0
        %610 = vmatprep.subr.bf16.mxu0 0
        %611 = vmatpush1.bf16.msra.mxu0 0
        %612 = vmatprep.subr.bf16.mxu0 0
        %613 = vmatpush1.bf16.msra.mxu0 0
        %614 = vmatprep.subr.bf16.mxu0 0
        %615 = vmatpush1.bf16.msra.mxu0 0
        %616 = vmatprep.subr.bf16.mxu0 0
        %617 = vmatpush1.bf16.msra.mxu0 0
        %618 = vmatprep.subr.bf16.mxu0 0
        %619 = vmatpush1.bf16.msra.mxu0 %v600
        %620 = vmatprep.subr.bf16.mxu0 0
        %621 = vmatpush1.bf16.msra.mxu0 %v599
        %622 = vmatprep.subr.bf16.mxu0 0
        %623 = vmatpush1.bf16.msra.mxu0 %v598
        %624 = vmatprep.subr.bf16.mxu0 0
        %625 = vmatpush2.bf16.msra.mxu0 0
        %626 = vmatprep.subr.bf16.mxu0 0
        %627 = vmatpush2.bf16.msra.mxu0 0
        %628 = vmatprep.subr.bf16.mxu0 0
        %629 = vmatpush2.bf16.msra.mxu0 0
        %630 = vmatprep.subr.bf16.mxu0 0
        %631 = vmatpush2.bf16.msra.mxu0 0
        %632 = vmatprep.subr.bf16.mxu0 0
        %633 = vmatpush2.bf16.msra.mxu0 0
        %634 = vmatprep.subr.bf16.mxu0 0
        %635 = vmatpush2.bf16.msra.mxu0 0
        %636 = vmatprep.subr.bf16.mxu0 0
        %637 = vmatpush2.bf16.msra.mxu0 0
        %638 = vmatprep.subr.bf16.mxu0 0
        %639 = vmatpush2.bf16.msra.mxu0 0
        %640 = vmatprep.mubr.bf16.mxu0 0
        %641 = vmatmul.mubr.bf16.gmra.mxu0 %v606
        %v642 = vpop.f32.mrf.mxu0
        %v643 = vadd.f32 %v579, %v642
        %v644 = vpop.f32.mrf.mxu0
        %v645 = vpop.f32.mrf.mxu0
        %v646 = vadd.f32 %v579, %v645
        %v647 = vpop.f32.mrf.mxu0
        %648 = vdwg.mxu0
        %v649 = vsub.f32 0.0, %v643
        %v650 = vsub.f32 0.0, %v646
        %v651 = vmul.f32 %v649, 1.442695
        %v652 = vpow.pop %v651
        %v653 = vmul.f32 %v650, 1.442695
        %v654 = vpow.pop %v653
        %v655 = vadd.f32 %v652, 1.0
        %v656 = vadd.f32 %v654, 1.0
        %v657 = vrcp.pop %v655
        %v658 = vrcp.pop %v656
        %v659 = vsub.f32 %v564, %v565
        %v660 = vand.u32 2147483647, %v659
        %v661 = vpack.c.bf16 %v660, %v660
        %v662 = vsub.f32 %v657, %v658
        %v663 = vand.u32 2147483647, %v662
        %v664 = vpack.c.bf16 %v663, %v663
        %v665 = vmul.f32 %v564, %v565
        %v666 = vpack.c.bf16 %v665, %v665
        %v667 = vmul.f32 %v657, %v658
        %v668 = vpack.c.bf16 %v667, %v667
        %v669 = vld [vmem:[%s6] sm:$0xf]
        %v670 = vld [vmem:[%s6 + $0x4] sm:$0xf]
        %v671 = vld [vmem:[%s6 + $0x8] sm:$0xf]
        %v672 = vld [vmem:[%s6 + $0xc] sm:$0xf]
        %v673 = vld [vmem:[%s7] sm:$0xf]
        %v674 = vld [vmem:[%s7 + $0x4] sm:$0xf]
        %v675 = vld [vmem:[%s7 + $0x8] sm:$0xf]
        %v676 = vld [vmem:[%s7 + $0xc] sm:$0xf]
        %v681 = vunpack.c.l.b16 %v673
        %v682 = vunpack.c.l.b16 %v674
        %v683 = vunpack.c.l.b16 %v675
        %v684 = vunpack.c.l.b16 %v676
        %v685 = vpack.c.b16 %v682, %v681
        %v686 = vpack.c.b16 %v684, %v683
        %vm689 = vcmask 261120
        %v691 = vsel %vm689, %v664, 0
        %693 = vmatprep.subr.bf16.mxu0 0
        %694 = vmatpush1.bf16.msra.mxu0 0
        %695 = vmatprep.subr.bf16.mxu0 0
        %696 = vmatpush1.bf16.msra.mxu0 0
        %697 = vmatprep.subr.bf16.mxu0 0
        %698 = vmatpush1.bf16.msra.mxu0 0
        %699 = vmatprep.subr.bf16.mxu0 0
        %700 = vmatpush1.bf16.msra.mxu0 0
        %701 = vmatprep.subr.bf16.mxu0 0
        %702 = vmatpush1.bf16.msra.mxu0 0
        %703 = vmatprep.subr.bf16.mxu0 0
        %704 = vmatpush1.bf16.msra.mxu0 0
        %705 = vmatprep.subr.bf16.mxu0 0
        %706 = vmatpush1.bf16.msra.mxu0 %v686
        %707 = vmatprep.subr.bf16.mxu0 0
        %708 = vmatpush1.bf16.msra.mxu0 %v685
        %709 = vmatprep.subr.bf16.mxu0 0
        %710 = vmatpush2.bf16.msra.mxu0 0
        %711 = vmatprep.subr.bf16.mxu0 0
        %712 = vmatpush2.bf16.msra.mxu0 0
        %713 = vmatprep.subr.bf16.mxu0 0
        %714 = vmatpush2.bf16.msra.mxu0 0
        %715 = vmatprep.subr.bf16.mxu0 0
        %716 = vmatpush2.bf16.msra.mxu0 0
        %717 = vmatprep.subr.bf16.mxu0 0
        %718 = vmatpush2.bf16.msra.mxu0 0
        %719 = vmatprep.subr.bf16.mxu0 0
        %720 = vmatpush2.bf16.msra.mxu0 0
        %721 = vmatprep.subr.bf16.mxu0 0
        %722 = vmatpush2.bf16.msra.mxu0 0
        %723 = vmatprep.subr.bf16.mxu0 0
        %724 = vmatpush2.bf16.msra.mxu0 0
        %725 = vmatprep.mubr.bf16.mxu0 0
        %726 = vmatmul.mubr.bf16.gmra.mxu0 %v691
        %v727 = vpop.f32.mrf.mxu0
        %v728 = vadd.f32 0.0, %v727
        %v729 = vpop.f32.mrf.mxu0
        %v730 = vpop.f32.mrf.mxu0
        %v731 = vpop.f32.mrf.mxu0
        %732 = vdwg.mxu0
        %v737 = vunpack.c.l.b16 %v669
        %v738 = vunpack.c.l.b16 %v670
        %v739 = vunpack.c.l.b16 %v671
        %v740 = vunpack.c.l.b16 %v672
        %v741 = vpack.c.b16 %v738, %v737
        %v742 = vpack.c.b16 %v740, %v739
        %v746 = vsel %vm689, %v661, 0
        %748 = vmatprep.subr.bf16.mxu0 0
        %749 = vmatpush1.bf16.msra.mxu0 0
        %750 = vmatprep.subr.bf16.mxu0 0
        %751 = vmatpush1.bf16.msra.mxu0 0
        %752 = vmatprep.subr.bf16.mxu0 0
        %753 = vmatpush1.bf16.msra.mxu0 0
        %754 = vmatprep.subr.bf16.mxu0 0
        %755 = vmatpush1.bf16.msra.mxu0 0
        %756 = vmatprep.subr.bf16.mxu0 0
        %757 = vmatpush1.bf16.msra.mxu0 0
        %758 = vmatprep.subr.bf16.mxu0 0
        %759 = vmatpush1.bf16.msra.mxu0 0
        %760 = vmatprep.subr.bf16.mxu0 0
        %761 = vmatpush1.bf16.msra.mxu0 %v742
        %762 = vmatprep.subr.bf16.mxu0 0
        %763 = vmatpush1.bf16.msra.mxu0 %v741
        %764 = vmatprep.subr.bf16.mxu0 0
        %765 = vmatpush2.bf16.msra.mxu0 0
        %766 = vmatprep.subr.bf16.mxu0 0
        %767 = vmatpush2.bf16.msra.mxu0 0
        %768 = vmatprep.subr.bf16.mxu0 0
        %769 = vmatpush2.bf16.msra.mxu0 0
        %770 = vmatprep.subr.bf16.mxu0 0
        %771 = vmatpush2.bf16.msra.mxu0 0
        %772 = vmatprep.subr.bf16.mxu0 0
        %773 = vmatpush2.bf16.msra.mxu0 0
        %774 = vmatprep.subr.bf16.mxu0 0
        %775 = vmatpush2.bf16.msra.mxu0 0
        %776 = vmatprep.subr.bf16.mxu0 0
        %777 = vmatpush2.bf16.msra.mxu0 0
        %778 = vmatprep.subr.bf16.mxu0 0
        %779 = vmatpush2.bf16.msra.mxu0 0
        %780 = vmatprep.mubr.bf16.mxu0 0
        %781 = vmatmul.mubr.bf16.gmra.mxu0 %v746
        %v782 = vpop.f32.mrf.mxu0
        %v783 = vadd.f32 %v728, %v782
        %v784 = vpop.f32.mrf.mxu0
        %v785 = vpop.f32.mrf.mxu0
        %v786 = vpop.f32.mrf.mxu0
        %787 = vdwg.mxu0
        %v788 = vld [vmem:[%s8] sm:$0xf]
        %v789 = vld [vmem:[%s8 + $0x4] sm:$0xf]
        %v790 = vld [vmem:[%s8 + $0x8] sm:$0xf]
        %v791 = vld [vmem:[%s8 + $0xc] sm:$0xf]
        %v796 = vunpack.c.l.b16 %v788
        %v797 = vunpack.c.l.b16 %v789
        %v798 = vunpack.c.l.b16 %v790
        %v799 = vunpack.c.l.b16 %v791
        %v800 = vpack.c.b16 %v797, %v796
        %v801 = vpack.c.b16 %v799, %v798
        %v805 = vsel %vm689, %v666, 0
        %807 = vmatprep.subr.bf16.mxu0 0
        %808 = vmatpush1.bf16.msra.mxu0 0
        %809 = vmatprep.subr.bf16.mxu0 0
        %810 = vmatpush1.bf16.msra.mxu0 0
        %811 = vmatprep.subr.bf16.mxu0 0
        %812 = vmatpush1.bf16.msra.mxu0 0
        %813 = vmatprep.subr.bf16.mxu0 0
        %814 = vmatpush1.bf16.msra.mxu0 0
        %815 = vmatprep.subr.bf16.mxu0 0
        %816 = vmatpush1.bf16.msra.mxu0 0
        %817 = vmatprep.subr.bf16.mxu0 0
        %818 = vmatpush1.bf16.msra.mxu0 0
        %819 = vmatprep.subr.bf16.mxu0 0
        %820 = vmatpush1.bf16.msra.mxu0 %v801
        %821 = vmatprep.subr.bf16.mxu0 0
        %822 = vmatpush1.bf16.msra.mxu0 %v800
        %823 = vmatprep.subr.bf16.mxu0 0
        %824 = vmatpush2.bf16.msra.mxu0 0
        %825 = vmatprep.subr.bf16.mxu0 0
        %826 = vmatpush2.bf16.msra.mxu0 0
        %827 = vmatprep.subr.bf16.mxu0 0
        %828 = vmatpush2.bf16.msra.mxu0 0
        %829 = vmatprep.subr.bf16.mxu0 0
        %830 = vmatpush2.bf16.msra.mxu0 0
        %831 = vmatprep.subr.bf16.mxu0 0
        %832 = vmatpush2.bf16.msra.mxu0 0
        %833 = vmatprep.subr.bf16.mxu0 0
        %834 = vmatpush2.bf16.msra.mxu0 0
        %835 = vmatprep.subr.bf16.mxu0 0
        %836 = vmatpush2.bf16.msra.mxu0 0
        %837 = vmatprep.subr.bf16.mxu0 0
        %838 = vmatpush2.bf16.msra.mxu0 0
        %839 = vmatprep.mubr.bf16.mxu0 0
        %840 = vmatmul.mubr.bf16.gmra.mxu0 %v805
        %v841 = vpop.f32.mrf.mxu0
        %v842 = vadd.f32 0.0, %v841
        %v843 = vpop.f32.mrf.mxu0
        %v844 = vpop.f32.mrf.mxu0
        %v845 = vpop.f32.mrf.mxu0
        %846 = vdwg.mxu0
        %v847 = vadd.f32 %v783, %v842
        %v848 = vld [vmem:[%s9] sm:$0xf]
        %v849 = vld [vmem:[%s9 + $0x4] sm:$0xf]
        %v850 = vld [vmem:[%s9 + $0x8] sm:$0xf]
        %v851 = vld [vmem:[%s9 + $0xc] sm:$0xf]
        %v856 = vunpack.c.l.b16 %v848
        %v857 = vunpack.c.l.b16 %v849
        %v858 = vunpack.c.l.b16 %v850
        %v859 = vunpack.c.l.b16 %v851
        %v860 = vpack.c.b16 %v857, %v856
        %v861 = vpack.c.b16 %v859, %v858
        %v865 = vsel %vm689, %v668, 0
        %867 = vmatprep.subr.bf16.mxu0 0
        %868 = vmatpush1.bf16.msra.mxu0 0
        %869 = vmatprep.subr.bf16.mxu0 0
        %870 = vmatpush1.bf16.msra.mxu0 0
        %871 = vmatprep.subr.bf16.mxu0 0
        %872 = vmatpush1.bf16.msra.mxu0 0
        %873 = vmatprep.subr.bf16.mxu0 0
        %874 = vmatpush1.bf16.msra.mxu0 0
        %875 = vmatprep.subr.bf16.mxu0 0
        %876 = vmatpush1.bf16.msra.mxu0 0
        %877 = vmatprep.subr.bf16.mxu0 0
        %878 = vmatpush1.bf16.msra.mxu0 0
        %879 = vmatprep.subr.bf16.mxu0 0
        %880 = vmatpush1.bf16.msra.mxu0 %v861
        %881 = vmatprep.subr.bf16.mxu0 0
        %882 = vmatpush1.bf16.msra.mxu0 %v860
        %883 = vmatprep.subr.bf16.mxu0 0
        %884 = vmatpush2.bf16.msra.mxu0 0
        %885 = vmatprep.subr.bf16.mxu0 0
        %886 = vmatpush2.bf16.msra.mxu0 0
        %887 = vmatprep.subr.bf16.mxu0 0
        %888 = vmatpush2.bf16.msra.mxu0 0
        %889 = vmatprep.subr.bf16.mxu0 0
        %890 = vmatpush2.bf16.msra.mxu0 0
        %891 = vmatprep.subr.bf16.mxu0 0
        %892 = vmatpush2.bf16.msra.mxu0 0
        %893 = vmatprep.subr.bf16.mxu0 0
        %894 = vmatpush2.bf16.msra.mxu0 0
        %895 = vmatprep.subr.bf16.mxu0 0
        %896 = vmatpush2.bf16.msra.mxu0 0
        %897 = vmatprep.subr.bf16.mxu0 0
        %898 = vmatpush2.bf16.msra.mxu0 0
        %899 = vmatprep.mubr.bf16.mxu0 0
        %900 = vmatmul.mubr.bf16.gmra.mxu0 %v865
        %v901 = vpop.f32.mrf.mxu0
        %v902 = vadd.f32 0.0, %v901
        %v903 = vpop.f32.mrf.mxu0
        %v904 = vpop.f32.mrf.mxu0
        %v905 = vpop.f32.mrf.mxu0
        %906 = vdwg.mxu0
        %v907 = vadd.f32 %v847, %v902
        %v908 = vld [vmem:[%s10] sm:$0x1]
        %v910 = vlaneseq
        %v911 = vshrl.u32 %v910, 7
        %v912 = vsub.s32 0, %v911
        %v913 = vrot.slane %v908, %v912
        %v915 = vadd.f32 %v907, %v913
        %v916 = vsub.f32 0.0, %v915
        %v917 = vmul.f32 %v916, 1.442695
        %v918 = vpow.pop %v917
        %v919 = vadd.f32 %v918, 1.0
        %v920 = vrcp.pop %v919
        %v921 = vld [vmem:[%s11] sm:$0x1]
        %v923 = vlaneseq
        %v924 = vshrl.u32 %v923, 7
        %v925 = vsub.s32 0, %v924
        %v926 = vrot.slane %v921, %v925
        %v928 = vmul.f32 %v920, %v926
        %vm929 = vcmask 130048
        %v930 = vsel %vm929, %v928, 0.0
        %931 = vadd.xlane.f32.xlu0 %v930
        %v932 = vpop.xlane.xlu0 %931
        %s933 = sld [smem:[#allocation2]]
        %v934 = vstv %s933
        %v935 = vadd.f32 %v932, %v934
        %936 = vst [vmem:[%s451] sm:$0xff] %v935
        %s937 = sand.u32 %s319, 1
        %s938 = scalar_lea.sflag [#allocation4], %s937
        %s939 = sand.u32 %s319, 1
        %s940 = smul.addr %s939, 8
        %s941 = scalar_lea.vmem [#allocation3], %s940
        // Predicated region
        $region73: #{tpu_custom_call.1} parent=71 // pred_check
          %p942 = pneg %p329
        $region74: #{tpu_custom_call.1} parent=71 // pred_check_branch
          %944 = sbr.rel (%p942) target = $region76
        $region75: #{tpu_custom_call.1} parent=71 // pred_region
          %s946 = ssub.s32 128, 128
          %947 = vsyncadd %s938, %s946
          %s948 = smul.addr %s28, 128
          %s949 = scalar_lea.hbm %s13, %s948
          %s951 = sshll.u32 %s941, 4
          %s952 = int_to_ptr.vmem [resolvable:$true] %s951
          %954 = dma.vmem_to_hbm [thread:$0]  %s952, 128, %s949, %s938
        $region76: #{tpu_custom_call.1} parent=71 // pred_fallthru
          _
      $region72: #{tpu_custom_call.1} parent=5 // pred_fallthru
        _
      %p955 = scmp.le.s32.totalorder 2, %s23
      // Predicated region
      $region77: #{tpu_custom_call.1} parent=5 // pred_check
        %p956 = pneg %p955
      $region78: #{tpu_custom_call.1} parent=5 // pred_check_branch
        %958 = sbr.rel (%p956) target = $region80
      $region79: #{tpu_custom_call.1} parent=5 // pred_region
        %s959 = ssub.s32 %s23, 2
        // Predicated region
        $region81: #{tpu_custom_call.1} parent=79 // pred_check
          %p960 = pneg %p335
        $region82: #{tpu_custom_call.1} parent=79 // pred_check_branch
          %962 = sbr.rel (%p960) target = $region84
        $region83: #{tpu_custom_call.1} parent=79 // pred_region
          %s963 = sand.u32 %s320, 1
          %s964 = scalar_lea.sflag [#allocation4], %s963
          %s965 = sand.u32 %s320, 1
          %s966 = smul.addr %s965, 8
          %s967 = scalar_lea.vmem [#allocation3], %s966
          %968 = dma.done %s964, 128
        $region84: #{tpu_custom_call.1} parent=79 // pred_fallthru
          _
      $region80: #{tpu_custom_call.1} parent=5 // pred_fallthru
        _
    $region6: #{tpu_custom_call.1} parent=1 // loop_footer
      %s27 = sadd.s32 1, %s23
    $region7: #{tpu_custom_call.1} parent=1 // loop_footer_branch
      %22 = sbr.rel target = $region3
    $region8: #{tpu_custom_call.1} parent=1 // loop_exit
      _
    %969 = vsyncpa [#allocation4], 1
    %s970 = scalar_lea.sflag [#allocation4], 1
    %971 = vsyncpa %s970, 1

</llo_original>
